<compile_context>
chip_gen: v6e
topology: v6e:2x2x1
jax: 0.10.0
libtpu: 0.0.40
codegen_flags: <defaults>
</compile_context>

<pallas_src>
import functools

import jax
import jax.numpy as jnp
from jax import lax
from jax.experimental import pallas as pl
from jax.experimental.pallas import tpu as pltpu

_BN_EPS = 1e-5
_LANE = 128
# Explicit scoped-VMEM limit: >= v5e's 16 MiB default, == v6e/v7x scoped default, and
# far above this kernel's actual footprint (a few MiB at block_b = 8192).
_VMEM_LIMIT = 32 * 1024 * 1024


def _sigmoid(z):
    # Single EUP op (tanh); the mul/add ride otherwise-idle VALU slots.
    return 0.5 * jnp.tanh(0.5 * z) + 0.5


# ---------------------------------------------------------------------------
# Pass 1: per-tile BatchNorm partial sums (megacore-parallel grid).
# Each grid step writes its own (8, F) row-group partials; the single cross-
# sublane / cross-tile reduction and the scale/shift finalize happen in the
# wrapper, so the XLU stays quiet and no sequential accumulator is needed.
# ---------------------------------------------------------------------------
def bn_partial_kernel(x_ref, sum_ref, sq_ref):
    xt = x_ref[...].astype(jnp.float32)          # (block_b, F)
    bb, f = xt.shape
    xg = xt.reshape(bb // 8, 8, f)               # leading-dim split: no data movement
    sum_ref[...] = jnp.sum(xg, axis=0)           # (8, F) VPU vreg adds
    sq_ref[...] = jnp.sum(xg * xg, axis=0)


# ---------------------------------------------------------------------------
# Pass 2: lane-dense transposed MLP.  BN is pre-folded into (w1, b1), -1/nu is
# pre-folded into (w3, b3), so this is matmul + sigmoid + matmul + sigmoid + matmul.
# Torch epilogue 1/nu * log(1/sigmoid(z) - 1) == -z/nu (exact, saturation-safe).
# ---------------------------------------------------------------------------
def mlp_t_kernel(x_ref, w1_ref, b1_ref, w2_ref, b2_ref, w3_ref, b3_ref, o_ref,
                 *, mm_dtype):
    xt = x_ref[...].astype(mm_dtype)                                    # (F, bb)
    z1 = jnp.dot(w1_ref[...], xt,
                 preferred_element_type=jnp.float32) + b1_ref[...]      # (d1, bb)
    h1 = _sigmoid(z1)
    z2 = jnp.dot(w2_ref[...], h1.astype(mm_dtype),
                 preferred_element_type=jnp.float32) + b2_ref[...]      # (d2, bb)
    h2 = _sigmoid(z2)
    o_ref[...] = jnp.dot(w3_ref[...], h2.astype(mm_dtype),
                         preferred_element_type=jnp.float32) + b3_ref[...]


# ---------------------------------------------------------------------------
# Fused path: whole (padded) batch resident in VMEM -> x is read from HBM once.
# Zero-padded columns contribute 0 to sum/sumsq, so stats use inv_n = 1/B_real.
# ---------------------------------------------------------------------------
def fused_kernel(x_ref, gamma_ref, beta_ref,
                 w1_ref, b1_ref, w2_ref, b2_ref, w3_ref, b3_ref,
                 o_ref, *, inv_n, mm_dtype):
    xt = x_ref[...].astype(jnp.float32)                                 # (F, Bp)
    s = jnp.sum(xt, axis=1, keepdims=True)                              # (F, 1)
    sq = jnp.sum(xt * xt, axis=1, keepdims=True)
    mean = s * inv_n
    var = jnp.maximum(sq * inv_n - mean * mean, 0.0)
    scale = gamma_ref[...] * lax.rsqrt(var + _BN_EPS)                   # (F, 1)
    shift = beta_ref[...] - mean * scale
    xn = (xt * scale + shift).astype(mm_dtype)                          # lane-dense
    z1 = jnp.dot(w1_ref[...], xn,
                 preferred_element_type=jnp.float32) + b1_ref[...]
    h1 = _sigmoid(z1)
    z2 = jnp.dot(w2_ref[...], h1.astype(mm_dtype),
                 preferred_element_type=jnp.float32) + b2_ref[...]
    h2 = _sigmoid(z2)
    o_ref[...] = jnp.dot(w3_ref[...], h2.astype(mm_dtype),
                         preferred_element_type=jnp.float32) + b3_ref[...]


def neural_network_forward(x, nu, params, *, block_b=8192,
                           matmul_dtype=jnp.bfloat16,
                           fuse_vmem_bytes=8 * 1024 * 1024,
                           force_two_pass=False):
    """x: (B, F); nu: scalar; params in torch layout (w: (out,in), b: (out,)).

    Returns (B, n_out) float32, matching train-mode BatchNorm1d semantics.
    """
    B, F = x.shape
    w1, b1 = params["w1"], params["b1"]          # (d1, F), (d1,)
    w2, b2 = params["w2"], params["b2"]          # (d2, d1), (d2,)
    w3, b3 = params["w3"], params["b3"]          # (d3, d2), (d3,)
    gamma = params["gamma"].astype(jnp.float32).reshape(-1)
    beta = params["beta"].astype(jnp.float32).reshape(-1)
    d1, d2, d3 = w1.shape[0], w2.shape[0], w3.shape[0]

    inv_nu = 1.0 / jnp.asarray(nu, jnp.float32)

    # --- batch padding + lane-aligned tile selection (never block_b = B blow-up) ---
    B_pad = ((B + _LANE - 1) // _LANE) * _LANE
    if B_pad != B:
        x = jnp.pad(x, ((0, B_pad - B), (0, 0)))          # zeros: BN stats stay exact
    cap = max(_LANE, (min(block_b, B_pad) // _LANE) * _LANE)
    block_b = cap
    while B_pad % block_b != 0:                           # largest lane-multiple divisor
        block_b -= _LANE
    nb = B_pad // block_b

    # -1/nu folded into the output layer; biases as lane-broadcast columns.
    w3_eff = (-inv_nu) * w3.astype(jnp.float32)
    b3_eff = ((-inv_nu) * b3.astype(jnp.float32)).reshape(d3, 1)
    b1c = b1.astype(jnp.float32).reshape(d1, 1)
    b2c = b2.astype(jnp.float32).reshape(d2, 1)
    w2_mm = w2.astype(matmul_dtype)
    w3_mm = w3_eff.astype(matmul_dtype)

    x_t = x.T                                              # (F, B_pad): batch on lanes

    def resident(a):                                       # whole array, VMEM-resident
        return pl.BlockSpec(a.shape, lambda i: (0,) * a.ndim)

    est_bytes = 4 * B_pad * (F + 2 * (d1 + d2) + d3) * 3   # rough live-temp estimate
    if not force_two_pass and est_bytes <= fuse_vmem_bytes:
        # ---------------- fused single kernel: stats + MLP, x DMA'd once ----------------
        g2 = gamma.reshape(F, 1)
        bt2 = beta.reshape(F, 1)
        w1_mm = w1.astype(matmul_dtype)
        out_t = pl.pallas_call(
            functools.partial(fused_kernel, inv_n=1.0 / B, mm_dtype=matmul_dtype),
            out_shape=jax.ShapeDtypeStruct((d3, B_pad), jnp.float32),
            grid=(1,),
            in_specs=[resident(x_t), resident(g2), resident(bt2),
                      resident(w1_mm), resident(b1c),
                      resident(w2_mm), resident(b2c),
                      resident(w3_mm), resident(b3_eff)],
            out_specs=pl.BlockSpec((d3, B_pad), lambda i: (0, 0)),
            compiler_params=pltpu.CompilerParams(
                dimension_semantics=("arbitrary",),
                vmem_limit_bytes=_VMEM_LIMIT),
        )(x_t, g2, bt2, w1_mm, b1c, w2_mm, b2c, w3_mm, b3_eff)
        return out_t.T[:B]

    # ---------------- pass 1: parallel per-tile BN partials ----------------
    psum, psq = pl.pallas_call(
        bn_partial_kernel,
        out_shape=(jax.ShapeDtypeStruct((nb * 8, F), jnp.float32),
                   jax.ShapeDtypeStruct((nb * 8, F), jnp.float32)),
        grid=(nb,),
        in_specs=[pl.BlockSpec((block_b, F), lambda i: (i, 0))],
        out_specs=(pl.BlockSpec((8, F), lambda i: (i, 0)),
                   pl.BlockSpec((8, F), lambda i: (i, 0))),
        compiler_params=pltpu.CompilerParams(
            dimension_semantics=("parallel",),
            vmem_limit_bytes=_VMEM_LIMIT),
    )(x)

    # tiny wrapper finalize: mean/var -> per-feature affine, folded into fc1
    mean = jnp.sum(psum, axis=0) / B
    var = jnp.maximum(jnp.sum(psq, axis=0) / B - mean * mean, 0.0)
    scale = gamma * lax.rsqrt(var + _BN_EPS)               # (F,)
    shift = beta - mean * scale                            # (F,)
    w1f = w1.astype(jnp.float32)
    w1_eff = (w1f * scale[None, :]).astype(matmul_dtype)   # (d1, F)
    b1_eff = (b1.astype(jnp.float32) + w1f @ shift).reshape(d1, 1)

    # ---------------- pass 2: tiled lane-dense transposed MLP ----------------
    out_t = pl.pallas_call(
        functools.partial(mlp_t_kernel, mm_dtype=matmul_dtype),
        out_shape=jax.ShapeDtypeStruct((d3, B_pad), jnp.float32),
        grid=(nb,),
        in_specs=[pl.BlockSpec((F, block_b), lambda i: (0, i)),
                  resident(w1_eff), resident(b1_eff),
                  resident(w2_mm), resident(b2c),
                  resident(w3_mm), resident(b3_eff)],
        out_specs=pl.BlockSpec((d3, block_b), lambda i: (0, i)),
        compiler_params=pltpu.CompilerParams(
            dimension_semantics=("parallel",),
            vmem_limit_bytes=_VMEM_LIMIT),
    )(x_t, w1_eff, b1_eff, w2_mm, b2c, w3_mm, b3_eff)
    return out_t.T[:B]


def init_params(key, n_var_flat, quadratic):
    """Deterministic synthetic init mimicking torch Linear/BatchNorm1d (torch layout)."""
    d1 = n_var_flat * 2
    d2 = n_var_flat + 5
    d3 = 2 if quadratic else 1

    def linear(k, fan_in, fan_out):
        kw, kb = jax.random.split(k)
        bound = 1.0 / jnp.sqrt(fan_in)
        w = jax.random.uniform(kw, (fan_out, fan_in), jnp.float32, -bound, bound)
        b = jax.random.uniform(kb, (fan_out,), jnp.float32, -bound, bound)
        return w, b

    k1, k2, k3 = jax.random.split(key, 3)
    w1, b1 = linear(k1, n_var_flat, d1)
    w2, b2 = linear(k2, d1, d2)
    w3, b3 = linear(k3, d2, d3)
    return {"gamma": jnp.ones((n_var_flat,), jnp.float32),
            "beta": jnp.zeros((n_var_flat,), jnp.float32),
            "w1": w1, "b1": b1, "w2": w2, "b2": b2, "w3": w3, "b3": b3}


def reference_forward(x, nu, params):
    """Pure-JAX reference matching the torch forward literally (train-mode BN)."""
    x = x.astype(jnp.float32)
    mean = jnp.mean(x, axis=0, keepdims=True)
    var = jnp.mean((x - mean) ** 2, axis=0, keepdims=True)
    xn = (x - mean) / jnp.sqrt(var + _BN_EPS) * params["gamma"] + params["beta"]
    h1 = jax.nn.sigmoid(xn @ params["w1"].T + params["b1"])
    h2 = jax.nn.sigmoid(h1 @ params["w2"].T + params["b2"])
    y = jax.nn.sigmoid(h2 @ params["w3"].T + params["b3"])
    return (1.0 / nu) * jnp.log(1.0 / y - 1.0)


if __name__ == "__main__":
    n_var_flat = 16
    quadratic = True
    nu = 2.0
    n_out = 2 if quadratic else 1

    key = jax.random.PRNGKey(0)
    kx, kp, kr = jax.random.split(key, 3)
    params = init_params(kp, n_var_flat, quadratic)

    # Case A: lane-aligned batch, fused single-kernel path, bf16 MXU operands.
    B = 256
    x = jax.random.normal(kx, (B, n_var_flat), dtype=jnp.float32)
    ref = reference_forward(x, nu, params)
    out_fused = jax.block_until_ready(neural_network_forward(x, nu, params))
    assert out_fused.shape == (B, n_out)
    assert bool(jnp.all(jnp.isfinite(out_fused)))
    assert jnp.allclose(out_fused, ref, atol=5e-2, rtol=5e-2), "fused bf16 path mismatch"

    # Case B: tiled two-pass path (parallel partial BN stats + transposed MLP), f32 MXU.
    out_tiled = jax.block_until_ready(
        neural_network_forward(x, nu, params, block_b=128,
                               matmul_dtype=jnp.float32, force_two_pass=True))
    assert out_tiled.shape == (B, n_out)
    assert bool(jnp.all(jnp.isfinite(out_tiled)))
    assert jnp.allclose(out_tiled, ref, atol=5e-2, rtol=5e-2), "two-pass f32 path mismatch"

    # Case C: ragged batch (padded to a lane multiple, sliced back), two-pass, bf16.
    Br = 200
    xr = jax.random.normal(kr, (Br, n_var_flat), dtype=jnp.float32)
    refr = reference_forward(xr, nu, params)
    out_ragged = jax.block_until_ready(
        neural_network_forward(xr, nu, params, block_b=128, force_two_pass=True))
    assert out_ragged.shape == (Br, n_out)
    assert bool(jnp.all(jnp.isfinite(out_ragged)))
    assert jnp.allclose(out_ragged, refr, atol=5e-2, rtol=5e-2), "ragged path mismatch"

    print("KERNEL_OK")
</pallas_src>

<mosaic_0001>
module attributes {stable_mosaic.version = 11 : i64} {
  func.func @fused_kernel(%arg0: i32, %arg1: memref<16x256xf32, #tpu.memory_space<vmem>>, %arg2: memref<16x1xf32, #tpu.memory_space<vmem>>, %arg3: memref<16x1xf32, #tpu.memory_space<vmem>>, %arg4: memref<32x16xbf16, #tpu.memory_space<vmem>>, %arg5: memref<32x1xf32, #tpu.memory_space<vmem>>, %arg6: memref<21x32xbf16, #tpu.memory_space<vmem>>, %arg7: memref<21x1xf32, #tpu.memory_space<vmem>>, %arg8: memref<2x21xbf16, #tpu.memory_space<vmem>>, %arg9: memref<2x1xf32, #tpu.memory_space<vmem>>, %arg10: memref<2x256xf32, #tpu.memory_space<vmem>>) attributes {dimension_semantics = [#tpu.dimension_semantics<arbitrary>], iteration_bounds = array<i64: 1>, scalar_prefetch = 0 : i64, scratch_operands = 0 : i64, tpu.core_type = #tpu.core_type<tc>, window_params = [{pipeline_mode = #tpu.pipeline_mode<synchronous>, transform_indices = @transform_0, window_bounds = array<i64: 16, 256>}, {pipeline_mode = #tpu.pipeline_mode<synchronous>, transform_indices = @transform_1, window_bounds = array<i64: 16, 1>}, {pipeline_mode = #tpu.pipeline_mode<synchronous>, transform_indices = @transform_2, window_bounds = array<i64: 16, 1>}, {pipeline_mode = #tpu.pipeline_mode<synchronous>, transform_indices = @transform_3, window_bounds = array<i64: 32, 16>}, {pipeline_mode = #tpu.pipeline_mode<synchronous>, transform_indices = @transform_4, window_bounds = array<i64: 32, 1>}, {pipeline_mode = #tpu.pipeline_mode<synchronous>, transform_indices = @transform_5, window_bounds = array<i64: 21, 32>}, {pipeline_mode = #tpu.pipeline_mode<synchronous>, transform_indices = @transform_6, window_bounds = array<i64: 21, 1>}, {pipeline_mode = #tpu.pipeline_mode<synchronous>, transform_indices = @transform_7, window_bounds = array<i64: 2, 21>}, {pipeline_mode = #tpu.pipeline_mode<synchronous>, transform_indices = @transform_8, window_bounds = array<i64: 2, 1>}, {pipeline_mode = #tpu.pipeline_mode<synchronous>, transform_indices = @transform_9, window_bounds = array<i64: 2, 256>}]} {
    %c0 = arith.constant 0 : index
    %c0_0 = arith.constant 0 : index
    %0 = vector.load %arg1[%c0, %c0_0] : memref<16x256xf32, #tpu.memory_space<vmem>>, vector<16x256xf32>
    %cst = arith.constant dense<0.000000e+00> : vector<16xf32>
    %1 = vector.multi_reduction <add>, %0, %cst [1] : vector<16x256xf32> to vector<16xf32>
    %2 = vector.shape_cast %1 : vector<16xf32> to vector<16x1xf32>
    %3 = arith.mulf %0, %0 : vector<16x256xf32>
    %cst_1 = arith.constant dense<0.000000e+00> : vector<16xf32>
    %4 = vector.multi_reduction <add>, %3, %cst_1 [1] : vector<16x256xf32> to vector<16xf32>
    %5 = vector.shape_cast %4 : vector<16xf32> to vector<16x1xf32>
    %cst_2 = arith.constant 3.906250e-03 : f32
    %6 = vector.broadcast %cst_2 : f32 to vector<16x1xf32>
    %7 = arith.mulf %2, %6 : vector<16x1xf32>
    %cst_3 = arith.constant 3.906250e-03 : f32
    %8 = vector.broadcast %cst_3 : f32 to vector<16x1xf32>
    %9 = arith.mulf %5, %8 : vector<16x1xf32>
    %10 = arith.mulf %7, %7 : vector<16x1xf32>
    %11 = arith.subf %9, %10 : vector<16x1xf32>
    %cst_4 = arith.constant 0.000000e+00 : f32
    %12 = vector.broadcast %cst_4 : f32 to vector<16x1xf32>
    %13 = arith.maximumf %11, %12 : vector<16x1xf32>
    %c0_5 = arith.constant 0 : index
    %c0_6 = arith.constant 0 : index
    %14 = vector.load %arg2[%c0_5, %c0_6] : memref<16x1xf32, #tpu.memory_space<vmem>>, vector<16x1xf32>
    %cst_7 = arith.constant 9.99999974E-6 : f32
    %15 = vector.broadcast %cst_7 : f32 to vector<16x1xf32>
    %16 = arith.addf %13, %15 : vector<16x1xf32>
    %17 = math.rsqrt %16 : vector<16x1xf32>
    %18 = arith.mulf %14, %17 : vector<16x1xf32>
    %c0_8 = arith.constant 0 : index
    %c0_9 = arith.constant 0 : index
    %19 = vector.load %arg3[%c0_8, %c0_9] : memref<16x1xf32, #tpu.memory_space<vmem>>, vector<16x1xf32>
    %20 = arith.mulf %7, %18 : vector<16x1xf32>
    %21 = arith.subf %19, %20 : vector<16x1xf32>
    %22 = vector.broadcast %18 : vector<16x1xf32> to vector<16x256xf32>
    %23 = arith.mulf %0, %22 : vector<16x256xf32>
    %24 = vector.broadcast %21 : vector<16x1xf32> to vector<16x256xf32>
    %25 = arith.addf %23, %24 : vector<16x256xf32>
    %26 = arith.truncf %25 : vector<16x256xf32> to vector<16x256xbf16>
    %c0_10 = arith.constant 0 : index
    %c0_11 = arith.constant 0 : index
    %27 = vector.load %arg4[%c0_10, %c0_11] : memref<32x16xbf16, #tpu.memory_space<vmem>>, vector<32x16xbf16>
    %cst_12 = arith.constant dense<0.000000e+00> : vector<32x256xf32>
    %28 = tpu.matmul %27, %26, %cst_12 {dimension_numbers = #tpu.dot_dimension_numbers<[1], [0], [0], [1], [0, 0, 1, 1], [], []>} : vector<32x16xbf16>, vector<16x256xbf16>, vector<32x256xf32> -> vector<32x256xf32>
    %c0_13 = arith.constant 0 : index
    %c0_14 = arith.constant 0 : index
    %29 = vector.load %arg5[%c0_13, %c0_14] : memref<32x1xf32, #tpu.memory_space<vmem>>, vector<32x1xf32>
    %30 = vector.broadcast %29 : vector<32x1xf32> to vector<32x256xf32>
    %31 = arith.addf %28, %30 : vector<32x256xf32>
    %cst_15 = arith.constant 5.000000e-01 : f32
    %32 = vector.broadcast %cst_15 : f32 to vector<32x256xf32>
    %33 = arith.mulf %32, %31 : vector<32x256xf32>
    %34 = math.tanh %33 : vector<32x256xf32>
    %cst_16 = arith.constant 5.000000e-01 : f32
    %35 = vector.broadcast %cst_16 : f32 to vector<32x256xf32>
    %36 = arith.mulf %35, %34 : vector<32x256xf32>
    %cst_17 = arith.constant 5.000000e-01 : f32
    %37 = vector.broadcast %cst_17 : f32 to vector<32x256xf32>
    %38 = arith.addf %36, %37 : vector<32x256xf32>
    %c0_18 = arith.constant 0 : index
    %c0_19 = arith.constant 0 : index
    %39 = vector.load %arg6[%c0_18, %c0_19] : memref<21x32xbf16, #tpu.memory_space<vmem>>, vector<21x32xbf16>
    %40 = arith.truncf %38 : vector<32x256xf32> to vector<32x256xbf16>
    %cst_20 = arith.constant dense<0.000000e+00> : vector<21x256xf32>
    %41 = tpu.matmul %39, %40, %cst_20 {dimension_numbers = #tpu.dot_dimension_numbers<[1], [0], [0], [1], [0, 0, 1, 1], [], []>} : vector<21x32xbf16>, vector<32x256xbf16>, vector<21x256xf32> -> vector<21x256xf32>
    %c0_21 = arith.constant 0 : index
    %c0_22 = arith.constant 0 : index
    %42 = vector.load %arg7[%c0_21, %c0_22] : memref<21x1xf32, #tpu.memory_space<vmem>>, vector<21x1xf32>
    %43 = vector.broadcast %42 : vector<21x1xf32> to vector<21x256xf32>
    %44 = arith.addf %41, %43 : vector<21x256xf32>
    %cst_23 = arith.constant 5.000000e-01 : f32
    %45 = vector.broadcast %cst_23 : f32 to vector<21x256xf32>
    %46 = arith.mulf %45, %44 : vector<21x256xf32>
    %47 = math.tanh %46 : vector<21x256xf32>
    %cst_24 = arith.constant 5.000000e-01 : f32
    %48 = vector.broadcast %cst_24 : f32 to vector<21x256xf32>
    %49 = arith.mulf %48, %47 : vector<21x256xf32>
    %cst_25 = arith.constant 5.000000e-01 : f32
    %50 = vector.broadcast %cst_25 : f32 to vector<21x256xf32>
    %51 = arith.addf %49, %50 : vector<21x256xf32>
    %c0_26 = arith.constant 0 : index
    %c0_27 = arith.constant 0 : index
    %52 = vector.load %arg8[%c0_26, %c0_27] : memref<2x21xbf16, #tpu.memory_space<vmem>>, vector<2x21xbf16>
    %53 = arith.truncf %51 : vector<21x256xf32> to vector<21x256xbf16>
    %cst_28 = arith.constant dense<0.000000e+00> : vector<2x256xf32>
    %54 = tpu.matmul %52, %53, %cst_28 {dimension_numbers = #tpu.dot_dimension_numbers<[1], [0], [0], [1], [0, 0, 1, 1], [], []>} : vector<2x21xbf16>, vector<21x256xbf16>, vector<2x256xf32> -> vector<2x256xf32>
    %c0_29 = arith.constant 0 : index
    %c0_30 = arith.constant 0 : index
    %55 = vector.load %arg9[%c0_29, %c0_30] : memref<2x1xf32, #tpu.memory_space<vmem>>, vector<2x1xf32>
    %56 = vector.broadcast %55 : vector<2x1xf32> to vector<2x256xf32>
    %57 = arith.addf %54, %56 : vector<2x256xf32>
    %c0_31 = arith.constant 0 : index
    %c0_32 = arith.constant 0 : index
    %58 = vector.load %arg10[%c0_31, %c0_32] : memref<2x256xf32, #tpu.memory_space<vmem>>, vector<2x256xf32>
    tpu.vector_store %arg10[%c0_31, %c0_32], %57 {strides = array<i32>} : memref<2x256xf32, #tpu.memory_space<vmem>>, vector<2x256xf32>,
    return
  }
  func.func @transform_0(%arg0: i32) -> (i32, i32) {
    %c0_i32 = arith.constant 0 : i32
    %c0_i32_0 = arith.constant 0 : i32
    %c0_i32_1 = arith.constant 0 : i32
    return %c0_i32, %c0_i32_0 : i32, i32
  }
  func.func @transform_1(%arg0: i32) -> (i32, i32) {
    %c0_i32 = arith.constant 0 : i32
    %c0_i32_0 = arith.constant 0 : i32
    %c0_i32_1 = arith.constant 0 : i32
    return %c0_i32, %c0_i32_0 : i32, i32
  }
  func.func @transform_2(%arg0: i32) -> (i32, i32) {
    %c0_i32 = arith.constant 0 : i32
    %c0_i32_0 = arith.constant 0 : i32
    %c0_i32_1 = arith.constant 0 : i32
    return %c0_i32, %c0_i32_0 : i32, i32
  }
  func.func @transform_3(%arg0: i32) -> (i32, i32) {
    %c0_i32 = arith.constant 0 : i32
    %c0_i32_0 = arith.constant 0 : i32
    %c0_i32_1 = arith.constant 0 : i32
    return %c0_i32, %c0_i32_0 : i32, i32
  }
  func.func @transform_4(%arg0: i32) -> (i32, i32) {
    %c0_i32 = arith.constant 0 : i32
    %c0_i32_0 = arith.constant 0 : i32
    %c0_i32_1 = arith.constant 0 : i32
    return %c0_i32, %c0_i32_0 : i32, i32
  }
  func.func @transform_5(%arg0: i32) -> (i32, i32) {
    %c0_i32 = arith.constant 0 : i32
    %c0_i32_0 = arith.constant 0 : i32
    %c0_i32_1 = arith.constant 0 : i32
    return %c0_i32, %c0_i32_0 : i32, i32
  }
  func.func @transform_6(%arg0: i32) -> (i32, i32) {
    %c0_i32 = arith.constant 0 : i32
    %c0_i32_0 = arith.constant 0 : i32
    %c0_i32_1 = arith.constant 0 : i32
    return %c0_i32, %c0_i32_0 : i32, i32
  }
  func.func @transform_7(%arg0: i32) -> (i32, i32) {
    %c0_i32 = arith.constant 0 : i32
    %c0_i32_0 = arith.constant 0 : i32
    %c0_i32_1 = arith.constant 0 : i32
    return %c0_i32, %c0_i32_0 : i32, i32
  }
  func.func @transform_8(%arg0: i32) -> (i32, i32) {
    %c0_i32 = arith.constant 0 : i32
    %c0_i32_0 = arith.constant 0 : i32
    %c0_i32_1 = arith.constant 0 : i32
    return %c0_i32, %c0_i32_0 : i32, i32
  }
  func.func @transform_9(%arg0: i32) -> (i32, i32) {
    %c0_i32 = arith.constant 0 : i32
    %c0_i32_0 = arith.constant 0 : i32
    %c0_i32_1 = arith.constant 0 : i32
    return %c0_i32, %c0_i32_0 : i32, i32
  }
}

</mosaic_0001>

<llo_original>
// kernel: tpu_custom_call.1
$region0: #{tpu_custom_call.1}
  #allocation0 [shape = 'u32[]', space=smem, size = 0x4, offset = 0x4, fixed_abs, tag = 'smem constant byte address 0x4 - core index']
  #allocation1 [shape = 'u32[144,128]{1,0:T(1,128)}', space=vmem, size = 0x12000, scoped, tag = 'internal scratch']
  %s0 = inlined_call_operand.vmem [shape: f32[16,256], index: 0, kind: input, shape index: {}]
  %s1 = inlined_call_operand.vmem [shape: f32[16,1], index: 1, kind: input, shape index: {}]
  %s2 = inlined_call_operand.vmem [shape: f32[16,1], index: 2, kind: input, shape index: {}]
  %s3 = inlined_call_operand.vmem [shape: bf16[32,16], index: 3, kind: input, shape index: {}]
  %s4 = inlined_call_operand.vmem [shape: f32[32,1], index: 4, kind: input, shape index: {}]
  %s5 = inlined_call_operand.vmem [shape: bf16[21,32], index: 5, kind: input, shape index: {}]
  %s6 = inlined_call_operand.vmem [shape: f32[21,1], index: 6, kind: input, shape index: {}]
  %s7 = inlined_call_operand.vmem [shape: bf16[2,21], index: 7, kind: input, shape index: {}]
  %s8 = inlined_call_operand.vmem [shape: f32[2,1], index: 8, kind: input, shape index: {}]
  %s9 = inlined_call_operand.hbm [shape: f32[2,256], index: 9, kind: output, shape index: {}]
  %s10 = sld [smem:[#allocation0]]
  $region46: #{tpu_custom_call.1} parent=0
    _
  %s12 = ssub.s32 1, %s10
  %s13 = scalar_select 0, %s12, %s10
  $region1: #{tpu_custom_call.1} parent=0
    #allocation2 [shape = 'u8[2048]{0}', space=vmem, size = 0x800, scoped, tag = 'output window, operand 0, single buffered']
    #allocation3 [shape = 's32[1]{0}', space=sflag, size = 0x4, scoped, tag = 'scoped memory for tpu_custom_call.1']
    %14 = vsyncpa [#allocation3], 0
    // Predicated region
    $region2: #{tpu_custom_call.1} parent=1 // pred_check
      _
    $region3: #{tpu_custom_call.1} parent=1 // pred_check_branch
      %16 = sbr.rel (0) target = $region5
    $region4: #{tpu_custom_call.1} parent=1 // pred_region
      _
    $region5: #{tpu_custom_call.1} parent=1 // pred_fallthru
      _
    // Predicated region
    $region6: #{tpu_custom_call.1} parent=1 // pred_check
      _
    $region7: #{tpu_custom_call.1} parent=1 // pred_check_branch
      %18 = sbr.rel (0) target = $region9
    $region8: #{tpu_custom_call.1} parent=1 // pred_region
      _
    $region9: #{tpu_custom_call.1} parent=1 // pred_fallthru
      _
    // Predicated region
    $region10: #{tpu_custom_call.1} parent=1 // pred_check
      _
    $region11: #{tpu_custom_call.1} parent=1 // pred_check_branch
      %20 = sbr.rel (0) target = $region13
    $region12: #{tpu_custom_call.1} parent=1 // pred_region
      _
    $region13: #{tpu_custom_call.1} parent=1 // pred_fallthru
      _
    // Predicated region
    $region14: #{tpu_custom_call.1} parent=1 // pred_check
      _
    $region15: #{tpu_custom_call.1} parent=1 // pred_check_branch
      %22 = sbr.rel (0) target = $region17
    $region16: #{tpu_custom_call.1} parent=1 // pred_region
      _
    $region17: #{tpu_custom_call.1} parent=1 // pred_fallthru
      _
    // Predicated region
    $region18: #{tpu_custom_call.1} parent=1 // pred_check
      _
    $region19: #{tpu_custom_call.1} parent=1 // pred_check_branch
      %24 = sbr.rel (0) target = $region21
    $region20: #{tpu_custom_call.1} parent=1 // pred_region
      _
    $region21: #{tpu_custom_call.1} parent=1 // pred_fallthru
      _
    // Predicated region
    $region22: #{tpu_custom_call.1} parent=1 // pred_check
      _
    $region23: #{tpu_custom_call.1} parent=1 // pred_check_branch
      %26 = sbr.rel (0) target = $region25
    $region24: #{tpu_custom_call.1} parent=1 // pred_region
      _
    $region25: #{tpu_custom_call.1} parent=1 // pred_fallthru
      _
    // Predicated region
    $region26: #{tpu_custom_call.1} parent=1 // pred_check
      _
    $region27: #{tpu_custom_call.1} parent=1 // pred_check_branch
      %28 = sbr.rel (0) target = $region29
    $region28: #{tpu_custom_call.1} parent=1 // pred_region
      _
    $region29: #{tpu_custom_call.1} parent=1 // pred_fallthru
      _
    // Predicated region
    $region30: #{tpu_custom_call.1} parent=1 // pred_check
      _
    $region31: #{tpu_custom_call.1} parent=1 // pred_check_branch
      %30 = sbr.rel (0) target = $region33
    $region32: #{tpu_custom_call.1} parent=1 // pred_region
      _
    $region33: #{tpu_custom_call.1} parent=1 // pred_fallthru
      _
    // Predicated region
    $region34: #{tpu_custom_call.1} parent=1 // pred_check
      _
    $region35: #{tpu_custom_call.1} parent=1 // pred_check_branch
      %32 = sbr.rel (0) target = $region37
    $region36: #{tpu_custom_call.1} parent=1 // pred_region
      _
    $region37: #{tpu_custom_call.1} parent=1 // pred_fallthru
      _
    %v34 = vld [vmem:[%s0] sm:$0xff]
    %v35 = vld [vmem:[%s0 + $0x8] sm:$0xff]
    %v36 = vld [vmem:[%s0 + $0x10] sm:$0xff]
    %v37 = vld [vmem:[%s0 + $0x18] sm:$0xff]
    %v38 = vadd.f32 %v34, %v35
    %39 = vadd.xlane.f32.xlu0 %v38
    %v40 = vpop.xlane.xlu0 %39
    %v41 = vadd.f32 %v36, %v37
    %42 = vadd.xlane.f32.xlu0 %v41
    %v43 = vpop.xlane.xlu0 %42
    %v44 = vmul.f32 %v34, %v34
    %v45 = vmul.f32 %v35, %v35
    %v46 = vmul.f32 %v36, %v36
    %v47 = vmul.f32 %v37, %v37
    %v48 = vadd.f32 %v44, %v45
    %49 = vadd.xlane.f32.xlu0 %v48
    %v50 = vpop.xlane.xlu0 %49
    %v51 = vadd.f32 %v46, %v47
    %52 = vadd.xlane.f32.xlu0 %v51
    %v53 = vpop.xlane.xlu0 %52
    %v54 = vmul.f32 %v40, 0.00390625
    %v55 = vmul.f32 %v43, 0.00390625
    %v56 = vmul.f32 %v50, 0.00390625
    %v57 = vmul.f32 %v53, 0.00390625
    %v58 = vmul.f32 %v54, %v54
    %v59 = vmul.f32 %v55, %v55
    %v60 = vsub.f32 %v56, %v58
    %v61 = vsub.f32 %v57, %v59
    %v62 = vmax.f32 %v60, 0.0
    %v63 = vmax.f32 %v61, 0.0
    %v64 = vld [vmem:[%s1] sm:$0xff]
    %v65 = vld [vmem:[%s1 + $0x8] sm:$0xff]
    %v66 = vadd.f32 %v62, 1e-05
    %v67 = vadd.f32 %v63, 1e-05
    %v68 = vrsqrt.pop %v66
    %v69 = vrsqrt.pop %v67
    %v70 = vmul.f32 %v64, %v68
    %v71 = vmul.f32 %v65, %v69
    %v72 = vld [vmem:[%s2] sm:$0xff]
    %v73 = vld [vmem:[%s2 + $0x8] sm:$0xff]
    %v74 = vmul.f32 %v54, %v70
    %v75 = vmul.f32 %v55, %v71
    %v76 = vsub.f32 %v72, %v74
    %v77 = vsub.f32 %v73, %v75
    %79 = vset.pattern.permute.xlu0 0
    %80 = vperm.xlu0 %79, %v70
    %v81 = vpop.permute.xlu0 %80
    %84 = vset.pattern.permute.xlu0 0
    %85 = vperm.xlu0 %84, %v71
    %v86 = vpop.permute.xlu0 %85
    %v88 = vmul.f32 %v34, %v81
    %v89 = vmul.f32 %v35, %v81
    %v90 = vmul.f32 %v36, %v86
    %v91 = vmul.f32 %v37, %v86
    %93 = vset.pattern.permute.xlu0 0
    %94 = vperm.xlu0 %93, %v76
    %v95 = vpop.permute.xlu0 %94
    %98 = vset.pattern.permute.xlu0 0
    %99 = vperm.xlu0 %98, %v77
    %v100 = vpop.permute.xlu0 %99
    %v102 = vadd.f32 %v88, %v95
    %v103 = vadd.f32 %v89, %v95
    %v104 = vadd.f32 %v90, %v100
    %v105 = vadd.f32 %v91, %v100
    %v106 = vpack.c.bf16 %v104, %v102
    %v107 = vpack.c.bf16 %v105, %v103
    %v108 = vld [vmem:[%s3] sm:$0xf]
    %v109 = vld [vmem:[%s3 + $0x4] sm:$0xf]
    %v110 = vld [vmem:[%s3 + $0x8] sm:$0xf]
    %v111 = vld [vmem:[%s3 + $0xc] sm:$0xf]
    %v112 = vld [vmem:[%s4] sm:$0xff]
    %v113 = vld [vmem:[%s4 + $0x8] sm:$0xff]
    %v114 = vld [vmem:[%s4 + $0x10] sm:$0xff]
    %v115 = vld [vmem:[%s4 + $0x18] sm:$0xff]
    %117 = vset.pattern.permute.xlu0 0
    %118 = vperm.xlu0 %117, %v112
    %v119 = vpop.permute.xlu0 %118
    %122 = vset.pattern.permute.xlu0 0
    %123 = vperm.xlu0 %122, %v113
    %v124 = vpop.permute.xlu0 %123
    %127 = vset.pattern.permute.xlu0 0
    %128 = vperm.xlu0 %127, %v114
    %v129 = vpop.permute.xlu0 %128
    %132 = vset.pattern.permute.xlu0 0
    %133 = vperm.xlu0 %132, %v115
    %v134 = vpop.permute.xlu0 %133
    %v140 = vunpack.c.l.b16 %v108
    %v141 = vunpack.c.l.b16 %v109
    %v142 = vunpack.c.l.b16 %v110
    %v143 = vunpack.c.l.b16 %v111
    %v144 = vpack.c.b16 %v141, %v140
    %v145 = vpack.c.b16 %v143, %v142
    %vm146 = vcmask 130048
    %v148 = vsel %vm146, %v144, 0
    %v151 = vsel %vm146, %v145, 0
    %153 = vmatprep.subr.bf16.mxu0 0
    %154 = vmatpush1.bf16.msra.mxu0 0
    %155 = vmatprep.subr.bf16.mxu0 0
    %156 = vmatpush1.bf16.msra.mxu0 0
    %157 = vmatprep.subr.bf16.mxu0 0
    %158 = vmatpush1.bf16.msra.mxu0 0
    %159 = vmatprep.subr.bf16.mxu0 0
    %160 = vmatpush1.bf16.msra.mxu0 0
    %161 = vmatprep.subr.bf16.mxu0 0
    %162 = vmatpush1.bf16.msra.mxu0 0
    %163 = vmatprep.subr.bf16.mxu0 0
    %164 = vmatpush1.bf16.msra.mxu0 0
    %165 = vmatprep.subr.bf16.mxu0 0
    %166 = vmatpush1.bf16.msra.mxu0 0
    %167 = vmatprep.subr.bf16.mxu0 %v107
    %168 = vmatpush1.bf16.msra.mxu0 %v106
    %169 = vmatprep.subr.bf16.mxu0 0
    %170 = vmatpush2.bf16.msra.mxu0 0
    %171 = vmatprep.subr.bf16.mxu0 0
    %172 = vmatpush2.bf16.msra.mxu0 0
    %173 = vmatprep.subr.bf16.mxu0 0
    %174 = vmatpush2.bf16.msra.mxu0 0
    %175 = vmatprep.subr.bf16.mxu0 0
    %176 = vmatpush2.bf16.msra.mxu0 0
    %177 = vmatprep.subr.bf16.mxu0 0
    %178 = vmatpush2.bf16.msra.mxu0 0
    %179 = vmatprep.subr.bf16.mxu0 0
    %180 = vmatpush2.bf16.msra.mxu0 0
    %181 = vmatprep.subr.bf16.mxu0 0
    %182 = vmatpush2.bf16.msra.mxu0 0
    %183 = vmatprep.subr.bf16.mxu0 0
    %184 = vmatpush2.bf16.msra.mxu0 0
    %185 = vmatprep.mubr.bf16.mxu0 0
    %186 = vmatmul.mubr.bf16.gmra.mxu0 %v148
    %v187 = vpop.f32.mrf.mxu0
    %v188 = vadd.f32 %v119, %v187
    %v189 = vpop.f32.mrf.mxu0
    %v190 = vadd.f32 %v119, %v189
    %v191 = vpop.f32.mrf.mxu0
    %v192 = vadd.f32 %v124, %v191
    %v193 = vpop.f32.mrf.mxu0
    %v194 = vadd.f32 %v124, %v193
    %195 = vmatprep.mubr.bf16.mxu0 0
    %196 = vmatmul.mubr.bf16.gmra.mxu0 %v151
    %v197 = vpop.f32.mrf.mxu0
    %v198 = vadd.f32 %v129, %v197
    %v199 = vpop.f32.mrf.mxu0
    %v200 = vadd.f32 %v129, %v199
    %v201 = vpop.f32.mrf.mxu0
    %v202 = vadd.f32 %v134, %v201
    %v203 = vpop.f32.mrf.mxu0
    %v204 = vadd.f32 %v134, %v203
    %205 = vdwg.mxu0
    %v206 = vmul.f32 %v188, 0.5
    %v207 = vmul.f32 %v190, 0.5
    %v208 = vmul.f32 %v192, 0.5
    %v209 = vmul.f32 %v194, 0.5
    %v210 = vmul.f32 %v198, 0.5
    %v211 = vmul.f32 %v200, 0.5
    %v212 = vmul.f32 %v202, 0.5
    %v213 = vmul.f32 %v204, 0.5
    %v214 = vtanh.pop %v206
    %v215 = vtanh.pop %v207
    %v216 = vtanh.pop %v208
    %v217 = vtanh.pop %v209
    %v218 = vtanh.pop %v210
    %v219 = vtanh.pop %v211
    %v220 = vtanh.pop %v212
    %v221 = vtanh.pop %v213
    %v222 = vmul.f32 %v214, 0.5
    %v223 = vmul.f32 %v215, 0.5
    %v224 = vmul.f32 %v216, 0.5
    %v225 = vmul.f32 %v217, 0.5
    %v226 = vmul.f32 %v218, 0.5
    %v227 = vmul.f32 %v219, 0.5
    %v228 = vmul.f32 %v220, 0.5
    %v229 = vmul.f32 %v221, 0.5
    %v230 = vadd.f32 %v222, 0.5
    %v231 = vadd.f32 %v223, 0.5
    %v232 = vadd.f32 %v224, 0.5
    %v233 = vadd.f32 %v225, 0.5
    %v234 = vadd.f32 %v226, 0.5
    %v235 = vadd.f32 %v227, 0.5
    %v236 = vadd.f32 %v228, 0.5
    %v237 = vadd.f32 %v229, 0.5
    %v238 = vld [vmem:[%s5] sm:$0xf]
    %v239 = vld [vmem:[%s5 + $0x4] sm:$0xf]
    %v240 = vld [vmem:[%s5 + $0x8] sm:$0x7]
    %v241 = vpack.c.bf16 %v232, %v230
    %v242 = vpack.c.bf16 %v233, %v231
    %v243 = vpack.c.bf16 %v236, %v234
    %v244 = vpack.c.bf16 %v237, %v235
    %v245 = vld [vmem:[%s6] sm:$0xff]
    %v246 = vld [vmem:[%s6 + $0x8] sm:$0xff]
    %v247 = vld [vmem:[%s6 + $0x10] sm:$0x1f]
    %249 = vset.pattern.permute.xlu0 0
    %250 = vperm.xlu0 %249, %v245
    %v251 = vpop.permute.xlu0 %250
    %254 = vset.pattern.permute.xlu0 0
    %255 = vperm.xlu0 %254, %v246
    %v256 = vpop.permute.xlu0 %255
    %259 = vset.pattern.permute.xlu0 0
    %260 = vperm.xlu0 %259, %v247
    %v261 = vpop.permute.xlu0 %260
    %v266 = vunpack.c.l.b16 %v238
    %v267 = vunpack.c.l.b16 %v239
    %v268 = vunpack.c.l.b16 %v240
    %v269 = vpack.c.b16 %v267, %v266
    %v270 = vpack.c.b16 %v268, %v268
    %vm271 = vcmask 261120
    %v273 = vsel %vm271, %v269, 0
    %v276 = vsel %vm271, %v270, 0
    %278 = vmatprep.subr.bf16.mxu0 0
    %279 = vmatpush1.bf16.msra.mxu0 0
    %280 = vmatprep.subr.bf16.mxu0 0
    %281 = vmatpush1.bf16.msra.mxu0 0
    %282 = vmatprep.subr.bf16.mxu0 0
    %283 = vmatpush1.bf16.msra.mxu0 0
    %284 = vmatprep.subr.bf16.mxu0 0
    %285 = vmatpush1.bf16.msra.mxu0 0
    %286 = vmatprep.subr.bf16.mxu0 0
    %287 = vmatpush1.bf16.msra.mxu0 0
    %288 = vmatprep.subr.bf16.mxu0 0
    %289 = vmatpush1.bf16.msra.mxu0 0
    %290 = vmatprep.subr.bf16.mxu0 %v244
    %291 = vmatpush1.bf16.msra.mxu0 %v243
    %292 = vmatprep.subr.bf16.mxu0 %v242
    %293 = vmatpush1.bf16.msra.mxu0 %v241
    %294 = vmatprep.subr.bf16.mxu0 0
    %295 = vmatpush2.bf16.msra.mxu0 0
    %296 = vmatprep.subr.bf16.mxu0 0
    %297 = vmatpush2.bf16.msra.mxu0 0
    %298 = vmatprep.subr.bf16.mxu0 0
    %299 = vmatpush2.bf16.msra.mxu0 0
    %300 = vmatprep.subr.bf16.mxu0 0
    %301 = vmatpush2.bf16.msra.mxu0 0
    %302 = vmatprep.subr.bf16.mxu0 0
    %303 = vmatpush2.bf16.msra.mxu0 0
    %304 = vmatprep.subr.bf16.mxu0 0
    %305 = vmatpush2.bf16.msra.mxu0 0
    %306 = vmatprep.subr.bf16.mxu0 0
    %307 = vmatpush2.bf16.msra.mxu0 0
    %308 = vmatprep.subr.bf16.mxu0 0
    %309 = vmatpush2.bf16.msra.mxu0 0
    %310 = vmatprep.mubr.bf16.mxu0 0
    %311 = vmatmul.mubr.bf16.gmra.mxu0 %v273
    %v312 = vpop.f32.mrf.mxu0
    %v313 = vadd.f32 %v251, %v312
    %v314 = vpop.f32.mrf.mxu0
    %v315 = vadd.f32 %v251, %v314
    %v316 = vpop.f32.mrf.mxu0
    %v317 = vadd.f32 %v256, %v316
    %v318 = vpop.f32.mrf.mxu0
    %v319 = vadd.f32 %v256, %v318
    %320 = vmatprep.mubr.bf16.mxu0 0
    %321 = vmatmul.mubr.bf16.gmra.mxu0 %v276
    %v322 = vpop.f32.mrf.mxu0
    %v323 = vadd.f32 %v261, %v322
    %v324 = vpop.f32.mrf.mxu0
    %v325 = vadd.f32 %v261, %v324
    %v326 = vpop.f32.mrf.mxu0
    %v327 = vpop.f32.mrf.mxu0
    %328 = vdwg.mxu0
    %v329 = vmul.f32 %v313, 0.5
    %v330 = vmul.f32 %v315, 0.5
    %v331 = vmul.f32 %v317, 0.5
    %v332 = vmul.f32 %v319, 0.5
    %v333 = vmul.f32 %v323, 0.5
    %v334 = vmul.f32 %v325, 0.5
    %v335 = vtanh.pop %v329
    %v336 = vtanh.pop %v330
    %v337 = vtanh.pop %v331
    %v338 = vtanh.pop %v332
    %v339 = vtanh.pop %v333
    %v340 = vtanh.pop %v334
    %v341 = vmul.f32 %v335, 0.5
    %v342 = vmul.f32 %v336, 0.5
    %v343 = vmul.f32 %v337, 0.5
    %v344 = vmul.f32 %v338, 0.5
    %v345 = vmul.f32 %v339, 0.5
    %v346 = vmul.f32 %v340, 0.5
    %v347 = vadd.f32 %v341, 0.5
    %v348 = vadd.f32 %v342, 0.5
    %v349 = vadd.f32 %v343, 0.5
    %v350 = vadd.f32 %v344, 0.5
    %v351 = vadd.f32 %v345, 0.5
    %v352 = vadd.f32 %v346, 0.5
    %v353 = vld [vmem:[%s7] sm:$0x1]
    %v354 = vpack.c.bf16 %v349, %v347
    %v355 = vpack.c.bf16 %v350, %v348
    %v356 = vpack.c.bf16 %v351, %v351
    %v357 = vpack.c.bf16 %v352, %v352
    %v358 = vld [vmem:[%s8] sm:$0x3]
    %360 = vset.pattern.permute.xlu0 0
    %361 = vperm.xlu0 %360, %v358
    %v362 = vpop.permute.xlu0 %361
    %vm364 = vcmask 171008
    %v366 = vsel %vm364, %v353, 0
    %vm368 = vcmask 1041408
    %vm369 = vcmask 1042432
    %v370 = vsel %vm368, 4294967295, 65535
    %v371 = vsel %vm369, %v370, 0
    %v373 = vand.u32 %v356, %v371
    %v376 = vand.u32 %v357, %v371
    %378 = vmatprep.subr.bf16.mxu0 0
    %379 = vmatpush1.bf16.msra.mxu0 0
    %380 = vmatprep.subr.bf16.mxu0 0
    %381 = vmatpush1.bf16.msra.mxu0 0
    %382 = vmatprep.subr.bf16.mxu0 0
    %383 = vmatpush1.bf16.msra.mxu0 0
    %384 = vmatprep.subr.bf16.mxu0 0
    %385 = vmatpush1.bf16.msra.mxu0 0
    %386 = vmatprep.subr.bf16.mxu0 0
    %387 = vmatpush1.bf16.msra.mxu0 0
    %388 = vmatprep.subr.bf16.mxu0 0
    %389 = vmatpush1.bf16.msra.mxu0 0
    %390 = vmatprep.subr.bf16.mxu0 %v376
    %391 = vmatpush1.bf16.msra.mxu0 %v373
    %392 = vmatprep.subr.bf16.mxu0 %v355
    %393 = vmatpush1.bf16.msra.mxu0 %v354
    %394 = vmatprep.subr.bf16.mxu0 0
    %395 = vmatpush2.bf16.msra.mxu0 0
    %396 = vmatprep.subr.bf16.mxu0 0
    %397 = vmatpush2.bf16.msra.mxu0 0
    %398 = vmatprep.subr.bf16.mxu0 0
    %399 = vmatpush2.bf16.msra.mxu0 0
    %400 = vmatprep.subr.bf16.mxu0 0
    %401 = vmatpush2.bf16.msra.mxu0 0
    %402 = vmatprep.subr.bf16.mxu0 0
    %403 = vmatpush2.bf16.msra.mxu0 0
    %404 = vmatprep.subr.bf16.mxu0 0
    %405 = vmatpush2.bf16.msra.mxu0 0
    %406 = vmatprep.subr.bf16.mxu0 0
    %407 = vmatpush2.bf16.msra.mxu0 0
    %408 = vmatprep.subr.bf16.mxu0 0
    %409 = vmatpush2.bf16.msra.mxu0 0
    %410 = vmatprep.mubr.bf16.mxu0 0
    %411 = vmatmul.mubr.bf16.gmra.mxu0 %v366
    %v412 = vpop.f32.mrf.mxu0
    %v413 = vadd.f32 %v362, %v412
    %v414 = vpop.f32.mrf.mxu0
    %v415 = vadd.f32 %v362, %v414
    %v416 = vpop.f32.mrf.mxu0
    %v417 = vpop.f32.mrf.mxu0
    %418 = vdwg.mxu0
    %v421 = vcombine.low %v413, %v415
    %v423 = vunpack.c.l.s4 1983009808
    %v424 = vunpack.c.0.s8 %v423
    %v425 = vlaneseq
    %v426 = vshrl.u32 %v425, 7
    %v427 = vsub.s32 %v424, %v426
    %v428 = vrot.slane %v421, %v427
    %430 = vst [vmem:[#allocation2] sm:$0xf] %v428
    // Predicated region
    $region38: #{tpu_custom_call.1} parent=1 // pred_check
      _
    $region39: #{tpu_custom_call.1} parent=1 // pred_check_branch
      %432 = sbr.rel (0) target = $region41
    $region40: #{tpu_custom_call.1} parent=1 // pred_region
      %s434 = ssub.s32 64, 64
      %435 = vsyncadd [#allocation3], %s434
      %s437 = sshll.u32 [#allocation2], 4
      %s438 = int_to_ptr.vmem [resolvable:$true] %s437
      %440 = dma.vmem_to_hbm [thread:$0]  %s438, 64, %s9, [#allocation3]
    $region41: #{tpu_custom_call.1} parent=1 // pred_fallthru
      _
    // Predicated region
    $region42: #{tpu_custom_call.1} parent=1 // pred_check
      _
    $region43: #{tpu_custom_call.1} parent=1 // pred_check_branch
      %442 = sbr.rel (0) target = $region45
    $region44: #{tpu_custom_call.1} parent=1 // pred_region
      %443 = dma.done [#allocation3], 64
    $region45: #{tpu_custom_call.1} parent=1 // pred_fallthru
      _
    %444 = vsyncpa [#allocation3], 1

</llo_original>
